<compile_context>
chip_gen: v7x
topology: tpu7x:2x2x1
jax: 0.10.0
libtpu: 0.0.40
codegen_flags: <defaults>
</compile_context>

<pallas_src>
import functools

import jax
import jax.numpy as jnp
from jax import lax
from jax.experimental import pallas as pl
from jax.experimental.pallas import tpu as pltpu


def _tensorcores_per_chip():
    """Best-effort detection of chips with >1 TensorCore (v7x, megacore v4/v5p)."""
    try:
        kind = jax.devices()[0].device_kind.lower()
    except Exception:  # pragma: no cover - detection failure -> safe default
        return 1
    return 2 if any(t in kind for t in ("v7", "7x", "v4", "v5p")) else 1


def _mha_fused_kernel(x_ref, wqkv_ref, o_ref, *, n_heads, head_size):
    # x_ref:    (Bb, S, D)          bf16, Bb batch elements of this grid step
    # wqkv_ref: (D, 3*n_heads*H)    bf16, columns [Q heads | K heads | V heads],
    #                               1/sqrt(H) already folded into the Q columns
    # o_ref:    (Bb, S, n_heads*H)  concatenated-head output (x.dtype)
    Bb, S, D = x_ref.shape
    H = head_size
    NH = n_heads * H

    # Single wide MXU matmul for every batch element's / head's Q, K and V.
    x = x_ref[...].reshape(Bb * S, D)                          # bf16 (Bb*S, D)
    qkv = jnp.dot(x, wqkv_ref[...],
                  preferred_element_type=jnp.float32)          # (Bb*S, 3*NH) f32
    qkv = qkv.astype(jnp.bfloat16)

    # TODO(synk): convert these static loops to a grid axis / fori_loop (and a
    # flash KV loop) before growing S or n_heads; at these shapes live ranges
    # are a few vregs and the sub-128-lane slices are shape-inherent (NH=64).
    for b in range(Bb):
        qkv_b = qkv[b * S:(b + 1) * S, :]                      # (S, 3*NH)
        for h in range(n_heads):
            q_h = qkv_b[:, h * H:(h + 1) * H]                  # (S, H), pre-scaled
            k_h = qkv_b[:, NH + h * H: NH + (h + 1) * H]       # (S, H)
            v_h = qkv_b[:, 2 * NH + h * H: 2 * NH + (h + 1) * H]

            # Contract the last axes of both operands -> no explicit K transpose.
            scores = lax.dot_general(
                q_h, k_h,
                dimension_numbers=(((1,), (1,)), ((), ())),
                preferred_element_type=jnp.float32,
            )                                                  # (S, S) f32

            # Numerically stable softmax in f32; exact reciprocal on (S,1).
            m = jnp.max(scores, axis=-1, keepdims=True)
            e = jnp.exp(scores - m)
            denom = jnp.sum(e, axis=-1, keepdims=True)
            attn = e * pl.reciprocal(denom, approx=False)      # (S, S) f32

            out_h = jnp.dot(attn.astype(jnp.bfloat16), v_h,
                            preferred_element_type=jnp.float32)  # (S, H) f32

            # torch.cat([head(x) for head in heads], dim=-1) ordering: store
            # each head's slab directly into its output columns (no concat).
            o_ref[b, :, h * H:(h + 1) * H] = out_h.astype(o_ref.dtype)


def prepare_qkv_weights(wq, wk, wv):
    """Build the fused projection matrix ONCE (call outside the hot path).

    wq/wk/wv: (n_heads, head_size, in_size) -- PyTorch nn.Linear weight layout
    (bias=False).  Returns a bf16 (in_size, 3*n_heads*head_size) matrix whose
    Q columns already carry the 1/sqrt(head_size) softmax scale.
    """
    n_heads, H, D = wq.shape
    NH = n_heads * H

    def cat_heads(w):  # (n_heads, H, D) -> (D, n_heads*H); block h is w[h].T
        return jnp.transpose(w, (2, 0, 1)).reshape(D, NH)

    scale = 1.0 / jnp.sqrt(jnp.float32(H))
    w_qkv = jnp.concatenate(
        [cat_heads(wq.astype(jnp.float32)) * scale,   # scale folded into Q
         cat_heads(wk.astype(jnp.float32)),
         cat_heads(wv.astype(jnp.float32))], axis=1)  # (D, 3*NH)
    return w_qkv.astype(jnp.bfloat16)


def multi_head_attention(x, w_qkv, *, n_heads, head_size):
    """x: (B, S, D) f32; w_qkv: prepared bf16 (D, 3*n_heads*head_size).
    Returns (B, S, n_heads*head_size) in x.dtype."""
    B, S, D = x.shape
    NH = n_heads * head_size
    assert w_qkv.shape == (D, 3 * NH)

    # bf16 at the boundary: halves input DMA bytes; matmuls accumulate in f32.
    x_bf = x.astype(jnp.bfloat16)

    # Single-TC chips (v5e/v6e): one grid step over the whole batch (grid is a
    # serial loop there).  2-TC chips (v7x): keep B parallel steps so both
    # TensorCores are busy.
    if _tensorcores_per_chip() >= 2 and B >= 2:
        bb, grid = 1, (B,)
    else:
        bb, grid = B, (1,)

    kernel = functools.partial(_mha_fused_kernel,
                               n_heads=n_heads, head_size=head_size)

    return pl.pallas_call(
        kernel,
        out_shape=jax.ShapeDtypeStruct((B, S, NH), x.dtype),
        grid_spec=pltpu.PrefetchScalarGridSpec(
            num_scalar_prefetch=0,
            grid=grid,
            in_specs=[
                pl.BlockSpec((bb, S, D), lambda b: (b, 0, 0)),    # x (bf16)
                pl.BlockSpec((D, 3 * NH), lambda b: (0, 0)),      # fused W (resident)
            ],
            out_specs=pl.BlockSpec((bb, S, NH), lambda b: (b, 0, 0)),
        ),
        compiler_params=pltpu.CompilerParams(
            dimension_semantics=("parallel",),
        ),
    )(x_bf, w_qkv)


def multi_head_attention_ref(x, wq, wk, wv):
    """Pure-JAX (f32) reference matching the PyTorch module semantics."""
    head_size = wq.shape[1]
    outs = []
    for h in range(wq.shape[0]):
        q = x @ wq[h].T
        k = x @ wk[h].T
        v = x @ wv[h].T
        scores = jnp.einsum("bsh,bth->bst", q, k) / jnp.sqrt(
            jnp.float32(head_size))
        attn = jax.nn.softmax(scores, axis=-1)
        outs.append(jnp.einsum("bst,bth->bsh", attn, v))
    return jnp.concatenate(outs, axis=-1)


if __name__ == "__main__":
    # Small shapes consistent with the module's forward pass.
    B, S, in_size = 2, 8, 32
    n_heads, head_size = 4, 16

    key = jax.random.PRNGKey(0)
    kx, kq, kk, kv = jax.random.split(key, 4)

    x = jax.random.normal(kx, (B, S, in_size), dtype=jnp.float32)
    # nn.Linear(in_size, head_size, bias=False) weight is (head_size, in_size).
    wq = jax.random.normal(kq, (n_heads, head_size, in_size), jnp.float32) * 0.1
    wk = jax.random.normal(kk, (n_heads, head_size, in_size), jnp.float32) * 0.1
    wv = jax.random.normal(kv, (n_heads, head_size, in_size), jnp.float32) * 0.1

    # Fused/scaled bf16 weight built once, outside the per-call path.
    w_qkv = jax.block_until_ready(prepare_qkv_weights(wq, wk, wv))

    out = multi_head_attention(x, w_qkv, n_heads=n_heads, head_size=head_size)
    out = jax.block_until_ready(out)

    ref = multi_head_attention_ref(x, wq, wk, wv)
    assert out.shape == (B, S, n_heads * head_size)
    # bf16 matmul operands (f32 accumulation) -> relaxed (but tight) tolerance.
    assert jnp.allclose(out, ref, atol=2e-2, rtol=2e-2), (
        float(jnp.max(jnp.abs(out - ref))))

    print("KERNEL_OK")
</pallas_src>

<mosaic_0001>
module attributes {stable_mosaic.version = 11 : i64} {
  func.func @_mha_fused_kernel(%arg0: i32, %arg1: memref<2x8x32xbf16, #tpu.memory_space<vmem>>, %arg2: memref<32x192xbf16, #tpu.memory_space<vmem>>, %arg3: memref<2x8x64xf32, #tpu.memory_space<vmem>>) attributes {dimension_semantics = [#tpu.dimension_semantics<parallel>], iteration_bounds = array<i64: 1>, scalar_prefetch = 0 : i64, scratch_operands = 0 : i64, tpu.core_type = #tpu.core_type<tc>, window_params = [{transform_indices = @transform_0, window_bounds = array<i64: 2, 8, 32>}, {pipeline_mode = #tpu.pipeline_mode<synchronous>, transform_indices = @transform_1, window_bounds = array<i64: 32, 192>}, {transform_indices = @transform_2, window_bounds = array<i64: 2, 8, 64>}]} {
    %c0 = arith.constant 0 : index
    %c0_0 = arith.constant 0 : index
    %c0_1 = arith.constant 0 : index
    %0 = vector.load %arg1[%c0, %c0_0, %c0_1] : memref<2x8x32xbf16, #tpu.memory_space<vmem>>, vector<2x8x32xbf16>
    %1 = vector.shape_cast %0 : vector<2x8x32xbf16> to vector<16x32xbf16>
    %c0_2 = arith.constant 0 : index
    %c0_3 = arith.constant 0 : index
    %2 = vector.load %arg2[%c0_2, %c0_3] : memref<32x192xbf16, #tpu.memory_space<vmem>>, vector<32x192xbf16>
    %cst = arith.constant dense<0.000000e+00> : vector<16x192xf32>
    %3 = tpu.matmul %1, %2, %cst {dimension_numbers = #tpu.dot_dimension_numbers<[1], [0], [0], [1], [0, 0, 1, 1], [], []>} : vector<16x32xbf16>, vector<32x192xbf16>, vector<16x192xf32> -> vector<16x192xf32>
    %4 = arith.truncf %3 : vector<16x192xf32> to vector<16x192xbf16>
    %5 = vector.extract_strided_slice %4 {offsets = [0, 0], sizes = [8, 192], strides = [1, 1]} : vector<16x192xbf16> to vector<8x192xbf16>
    %6 = vector.extract_strided_slice %5 {offsets = [0, 0], sizes = [8, 16], strides = [1, 1]} : vector<8x192xbf16> to vector<8x16xbf16>
    %7 = vector.extract_strided_slice %5 {offsets = [0, 64], sizes = [8, 16], strides = [1, 1]} : vector<8x192xbf16> to vector<8x16xbf16>
    %8 = vector.extract_strided_slice %5 {offsets = [0, 128], sizes = [8, 16], strides = [1, 1]} : vector<8x192xbf16> to vector<8x16xbf16>
    %cst_4 = arith.constant dense<0.000000e+00> : vector<8x8xf32>
    %9 = tpu.matmul %6, %7, %cst_4 {dimension_numbers = #tpu.dot_dimension_numbers<[1], [1], [0], [0], [0, 0, 1, 0], [], []>} : vector<8x16xbf16>, vector<8x16xbf16>, vector<8x8xf32> -> vector<8x8xf32>
    %cst_5 = arith.constant dense<0xFF800000> : vector<8xf32>
    %10 = vector.multi_reduction <maximumf>, %9, %cst_5 [1] : vector<8x8xf32> to vector<8xf32>
    %11 = vector.shape_cast %10 : vector<8xf32> to vector<8x1xf32>
    %12 = vector.broadcast %11 : vector<8x1xf32> to vector<8x8xf32>
    %13 = arith.subf %9, %12 : vector<8x8xf32>
    %14 = math.exp %13 : vector<8x8xf32>
    %cst_6 = arith.constant dense<0.000000e+00> : vector<8xf32>
    %15 = vector.multi_reduction <add>, %14, %cst_6 [1] : vector<8x8xf32> to vector<8xf32>
    %16 = vector.shape_cast %15 : vector<8xf32> to vector<8x1xf32>
    %17 = tpu.reciprocal %16 : vector<8x1xf32> -> vector<8x1xf32>
    %18 = vector.broadcast %17 : vector<8x1xf32> to vector<8x8xf32>
    %19 = arith.mulf %14, %18 : vector<8x8xf32>
    %20 = arith.truncf %19 : vector<8x8xf32> to vector<8x8xbf16>
    %cst_7 = arith.constant dense<0.000000e+00> : vector<8x16xf32>
    %21 = tpu.matmul %20, %8, %cst_7 {dimension_numbers = #tpu.dot_dimension_numbers<[1], [0], [0], [1], [0, 0, 1, 1], [], []>} : vector<8x8xbf16>, vector<8x16xbf16>, vector<8x16xf32> -> vector<8x16xf32>
    %c0_8 = arith.constant 0 : index
    %c0_9 = arith.constant 0 : index
    %c0_10 = arith.constant 0 : index
    %22 = vector.load %arg3[%c0_8, %c0_9, %c0_10] : memref<2x8x64xf32, #tpu.memory_space<vmem>>, vector<1x8x16xf32>
    %23 = vector.shape_cast %22 : vector<1x8x16xf32> to vector<8x16xf32>
    %24 = vector.shape_cast %21 : vector<8x16xf32> to vector<1x8x16xf32>
    tpu.vector_store %arg3[%c0_8, %c0_9, %c0_10], %24 {strides = array<i32>} : memref<2x8x64xf32, #tpu.memory_space<vmem>>, vector<1x8x16xf32>,
    %25 = vector.extract_strided_slice %5 {offsets = [0, 16], sizes = [8, 16], strides = [1, 1]} : vector<8x192xbf16> to vector<8x16xbf16>
    %26 = vector.extract_strided_slice %5 {offsets = [0, 80], sizes = [8, 16], strides = [1, 1]} : vector<8x192xbf16> to vector<8x16xbf16>
    %27 = vector.extract_strided_slice %5 {offsets = [0, 144], sizes = [8, 16], strides = [1, 1]} : vector<8x192xbf16> to vector<8x16xbf16>
    %cst_11 = arith.constant dense<0.000000e+00> : vector<8x8xf32>
    %28 = tpu.matmul %25, %26, %cst_11 {dimension_numbers = #tpu.dot_dimension_numbers<[1], [1], [0], [0], [0, 0, 1, 0], [], []>} : vector<8x16xbf16>, vector<8x16xbf16>, vector<8x8xf32> -> vector<8x8xf32>
    %cst_12 = arith.constant dense<0xFF800000> : vector<8xf32>
    %29 = vector.multi_reduction <maximumf>, %28, %cst_12 [1] : vector<8x8xf32> to vector<8xf32>
    %30 = vector.shape_cast %29 : vector<8xf32> to vector<8x1xf32>
    %31 = vector.broadcast %30 : vector<8x1xf32> to vector<8x8xf32>
    %32 = arith.subf %28, %31 : vector<8x8xf32>
    %33 = math.exp %32 : vector<8x8xf32>
    %cst_13 = arith.constant dense<0.000000e+00> : vector<8xf32>
    %34 = vector.multi_reduction <add>, %33, %cst_13 [1] : vector<8x8xf32> to vector<8xf32>
    %35 = vector.shape_cast %34 : vector<8xf32> to vector<8x1xf32>
    %36 = tpu.reciprocal %35 : vector<8x1xf32> -> vector<8x1xf32>
    %37 = vector.broadcast %36 : vector<8x1xf32> to vector<8x8xf32>
    %38 = arith.mulf %33, %37 : vector<8x8xf32>
    %39 = arith.truncf %38 : vector<8x8xf32> to vector<8x8xbf16>
    %cst_14 = arith.constant dense<0.000000e+00> : vector<8x16xf32>
    %40 = tpu.matmul %39, %27, %cst_14 {dimension_numbers = #tpu.dot_dimension_numbers<[1], [0], [0], [1], [0, 0, 1, 1], [], []>} : vector<8x8xbf16>, vector<8x16xbf16>, vector<8x16xf32> -> vector<8x16xf32>
    %c0_15 = arith.constant 0 : index
    %c0_16 = arith.constant 0 : index
    %c16 = arith.constant 16 : index
    %41 = vector.load %arg3[%c0_15, %c0_16, %c16] : memref<2x8x64xf32, #tpu.memory_space<vmem>>, vector<1x8x16xf32>
    %42 = vector.shape_cast %41 : vector<1x8x16xf32> to vector<8x16xf32>
    %43 = vector.shape_cast %40 : vector<8x16xf32> to vector<1x8x16xf32>
    tpu.vector_store %arg3[%c0_15, %c0_16, %c16], %43 {strides = array<i32>} : memref<2x8x64xf32, #tpu.memory_space<vmem>>, vector<1x8x16xf32>,
    %44 = vector.extract_strided_slice %5 {offsets = [0, 32], sizes = [8, 16], strides = [1, 1]} : vector<8x192xbf16> to vector<8x16xbf16>
    %45 = vector.extract_strided_slice %5 {offsets = [0, 96], sizes = [8, 16], strides = [1, 1]} : vector<8x192xbf16> to vector<8x16xbf16>
    %46 = vector.extract_strided_slice %5 {offsets = [0, 160], sizes = [8, 16], strides = [1, 1]} : vector<8x192xbf16> to vector<8x16xbf16>
    %cst_17 = arith.constant dense<0.000000e+00> : vector<8x8xf32>
    %47 = tpu.matmul %44, %45, %cst_17 {dimension_numbers = #tpu.dot_dimension_numbers<[1], [1], [0], [0], [0, 0, 1, 0], [], []>} : vector<8x16xbf16>, vector<8x16xbf16>, vector<8x8xf32> -> vector<8x8xf32>
    %cst_18 = arith.constant dense<0xFF800000> : vector<8xf32>
    %48 = vector.multi_reduction <maximumf>, %47, %cst_18 [1] : vector<8x8xf32> to vector<8xf32>
    %49 = vector.shape_cast %48 : vector<8xf32> to vector<8x1xf32>
    %50 = vector.broadcast %49 : vector<8x1xf32> to vector<8x8xf32>
    %51 = arith.subf %47, %50 : vector<8x8xf32>
    %52 = math.exp %51 : vector<8x8xf32>
    %cst_19 = arith.constant dense<0.000000e+00> : vector<8xf32>
    %53 = vector.multi_reduction <add>, %52, %cst_19 [1] : vector<8x8xf32> to vector<8xf32>
    %54 = vector.shape_cast %53 : vector<8xf32> to vector<8x1xf32>
    %55 = tpu.reciprocal %54 : vector<8x1xf32> -> vector<8x1xf32>
    %56 = vector.broadcast %55 : vector<8x1xf32> to vector<8x8xf32>
    %57 = arith.mulf %52, %56 : vector<8x8xf32>
    %58 = arith.truncf %57 : vector<8x8xf32> to vector<8x8xbf16>
    %cst_20 = arith.constant dense<0.000000e+00> : vector<8x16xf32>
    %59 = tpu.matmul %58, %46, %cst_20 {dimension_numbers = #tpu.dot_dimension_numbers<[1], [0], [0], [1], [0, 0, 1, 1], [], []>} : vector<8x8xbf16>, vector<8x16xbf16>, vector<8x16xf32> -> vector<8x16xf32>
    %c0_21 = arith.constant 0 : index
    %c0_22 = arith.constant 0 : index
    %c32 = arith.constant 32 : index
    %60 = vector.load %arg3[%c0_21, %c0_22, %c32] : memref<2x8x64xf32, #tpu.memory_space<vmem>>, vector<1x8x16xf32>
    %61 = vector.shape_cast %60 : vector<1x8x16xf32> to vector<8x16xf32>
    %62 = vector.shape_cast %59 : vector<8x16xf32> to vector<1x8x16xf32>
    tpu.vector_store %arg3[%c0_21, %c0_22, %c32], %62 {strides = array<i32>} : memref<2x8x64xf32, #tpu.memory_space<vmem>>, vector<1x8x16xf32>,
    %63 = vector.extract_strided_slice %5 {offsets = [0, 48], sizes = [8, 16], strides = [1, 1]} : vector<8x192xbf16> to vector<8x16xbf16>
    %64 = vector.extract_strided_slice %5 {offsets = [0, 112], sizes = [8, 16], strides = [1, 1]} : vector<8x192xbf16> to vector<8x16xbf16>
    %65 = vector.extract_strided_slice %5 {offsets = [0, 176], sizes = [8, 16], strides = [1, 1]} : vector<8x192xbf16> to vector<8x16xbf16>
    %cst_23 = arith.constant dense<0.000000e+00> : vector<8x8xf32>
    %66 = tpu.matmul %63, %64, %cst_23 {dimension_numbers = #tpu.dot_dimension_numbers<[1], [1], [0], [0], [0, 0, 1, 0], [], []>} : vector<8x16xbf16>, vector<8x16xbf16>, vector<8x8xf32> -> vector<8x8xf32>
    %cst_24 = arith.constant dense<0xFF800000> : vector<8xf32>
    %67 = vector.multi_reduction <maximumf>, %66, %cst_24 [1] : vector<8x8xf32> to vector<8xf32>
    %68 = vector.shape_cast %67 : vector<8xf32> to vector<8x1xf32>
    %69 = vector.broadcast %68 : vector<8x1xf32> to vector<8x8xf32>
    %70 = arith.subf %66, %69 : vector<8x8xf32>
    %71 = math.exp %70 : vector<8x8xf32>
    %cst_25 = arith.constant dense<0.000000e+00> : vector<8xf32>
    %72 = vector.multi_reduction <add>, %71, %cst_25 [1] : vector<8x8xf32> to vector<8xf32>
    %73 = vector.shape_cast %72 : vector<8xf32> to vector<8x1xf32>
    %74 = tpu.reciprocal %73 : vector<8x1xf32> -> vector<8x1xf32>
    %75 = vector.broadcast %74 : vector<8x1xf32> to vector<8x8xf32>
    %76 = arith.mulf %71, %75 : vector<8x8xf32>
    %77 = arith.truncf %76 : vector<8x8xf32> to vector<8x8xbf16>
    %cst_26 = arith.constant dense<0.000000e+00> : vector<8x16xf32>
    %78 = tpu.matmul %77, %65, %cst_26 {dimension_numbers = #tpu.dot_dimension_numbers<[1], [0], [0], [1], [0, 0, 1, 1], [], []>} : vector<8x8xbf16>, vector<8x16xbf16>, vector<8x16xf32> -> vector<8x16xf32>
    %c0_27 = arith.constant 0 : index
    %c0_28 = arith.constant 0 : index
    %c48 = arith.constant 48 : index
    %79 = vector.load %arg3[%c0_27, %c0_28, %c48] : memref<2x8x64xf32, #tpu.memory_space<vmem>>, vector<1x8x16xf32>
    %80 = vector.shape_cast %79 : vector<1x8x16xf32> to vector<8x16xf32>
    %81 = vector.shape_cast %78 : vector<8x16xf32> to vector<1x8x16xf32>
    tpu.vector_store %arg3[%c0_27, %c0_28, %c48], %81 {strides = array<i32>} : memref<2x8x64xf32, #tpu.memory_space<vmem>>, vector<1x8x16xf32>,
    %82 = vector.extract_strided_slice %4 {offsets = [8, 0], sizes = [8, 192], strides = [1, 1]} : vector<16x192xbf16> to vector<8x192xbf16>
    %83 = vector.extract_strided_slice %82 {offsets = [0, 0], sizes = [8, 16], strides = [1, 1]} : vector<8x192xbf16> to vector<8x16xbf16>
    %84 = vector.extract_strided_slice %82 {offsets = [0, 64], sizes = [8, 16], strides = [1, 1]} : vector<8x192xbf16> to vector<8x16xbf16>
    %85 = vector.extract_strided_slice %82 {offsets = [0, 128], sizes = [8, 16], strides = [1, 1]} : vector<8x192xbf16> to vector<8x16xbf16>
    %cst_29 = arith.constant dense<0.000000e+00> : vector<8x8xf32>
    %86 = tpu.matmul %83, %84, %cst_29 {dimension_numbers = #tpu.dot_dimension_numbers<[1], [1], [0], [0], [0, 0, 1, 0], [], []>} : vector<8x16xbf16>, vector<8x16xbf16>, vector<8x8xf32> -> vector<8x8xf32>
    %cst_30 = arith.constant dense<0xFF800000> : vector<8xf32>
    %87 = vector.multi_reduction <maximumf>, %86, %cst_30 [1] : vector<8x8xf32> to vector<8xf32>
    %88 = vector.shape_cast %87 : vector<8xf32> to vector<8x1xf32>
    %89 = vector.broadcast %88 : vector<8x1xf32> to vector<8x8xf32>
    %90 = arith.subf %86, %89 : vector<8x8xf32>
    %91 = math.exp %90 : vector<8x8xf32>
    %cst_31 = arith.constant dense<0.000000e+00> : vector<8xf32>
    %92 = vector.multi_reduction <add>, %91, %cst_31 [1] : vector<8x8xf32> to vector<8xf32>
    %93 = vector.shape_cast %92 : vector<8xf32> to vector<8x1xf32>
    %94 = tpu.reciprocal %93 : vector<8x1xf32> -> vector<8x1xf32>
    %95 = vector.broadcast %94 : vector<8x1xf32> to vector<8x8xf32>
    %96 = arith.mulf %91, %95 : vector<8x8xf32>
    %97 = arith.truncf %96 : vector<8x8xf32> to vector<8x8xbf16>
    %cst_32 = arith.constant dense<0.000000e+00> : vector<8x16xf32>
    %98 = tpu.matmul %97, %85, %cst_32 {dimension_numbers = #tpu.dot_dimension_numbers<[1], [0], [0], [1], [0, 0, 1, 1], [], []>} : vector<8x8xbf16>, vector<8x16xbf16>, vector<8x16xf32> -> vector<8x16xf32>
    %c1 = arith.constant 1 : index
    %c0_33 = arith.constant 0 : index
    %c0_34 = arith.constant 0 : index
    %99 = vector.load %arg3[%c1, %c0_33, %c0_34] : memref<2x8x64xf32, #tpu.memory_space<vmem>>, vector<1x8x16xf32>
    %100 = vector.shape_cast %99 : vector<1x8x16xf32> to vector<8x16xf32>
    %101 = vector.shape_cast %98 : vector<8x16xf32> to vector<1x8x16xf32>
    tpu.vector_store %arg3[%c1, %c0_33, %c0_34], %101 {strides = array<i32>} : memref<2x8x64xf32, #tpu.memory_space<vmem>>, vector<1x8x16xf32>,
    %102 = vector.extract_strided_slice %82 {offsets = [0, 16], sizes = [8, 16], strides = [1, 1]} : vector<8x192xbf16> to vector<8x16xbf16>
    %103 = vector.extract_strided_slice %82 {offsets = [0, 80], sizes = [8, 16], strides = [1, 1]} : vector<8x192xbf16> to vector<8x16xbf16>
    %104 = vector.extract_strided_slice %82 {offsets = [0, 144], sizes = [8, 16], strides = [1, 1]} : vector<8x192xbf16> to vector<8x16xbf16>
    %cst_35 = arith.constant dense<0.000000e+00> : vector<8x8xf32>
    %105 = tpu.matmul %102, %103, %cst_35 {dimension_numbers = #tpu.dot_dimension_numbers<[1], [1], [0], [0], [0, 0, 1, 0], [], []>} : vector<8x16xbf16>, vector<8x16xbf16>, vector<8x8xf32> -> vector<8x8xf32>
    %cst_36 = arith.constant dense<0xFF800000> : vector<8xf32>
    %106 = vector.multi_reduction <maximumf>, %105, %cst_36 [1] : vector<8x8xf32> to vector<8xf32>
    %107 = vector.shape_cast %106 : vector<8xf32> to vector<8x1xf32>
    %108 = vector.broadcast %107 : vector<8x1xf32> to vector<8x8xf32>
    %109 = arith.subf %105, %108 : vector<8x8xf32>
    %110 = math.exp %109 : vector<8x8xf32>
    %cst_37 = arith.constant dense<0.000000e+00> : vector<8xf32>
    %111 = vector.multi_reduction <add>, %110, %cst_37 [1] : vector<8x8xf32> to vector<8xf32>
    %112 = vector.shape_cast %111 : vector<8xf32> to vector<8x1xf32>
    %113 = tpu.reciprocal %112 : vector<8x1xf32> -> vector<8x1xf32>
    %114 = vector.broadcast %113 : vector<8x1xf32> to vector<8x8xf32>
    %115 = arith.mulf %110, %114 : vector<8x8xf32>
    %116 = arith.truncf %115 : vector<8x8xf32> to vector<8x8xbf16>
    %cst_38 = arith.constant dense<0.000000e+00> : vector<8x16xf32>
    %117 = tpu.matmul %116, %104, %cst_38 {dimension_numbers = #tpu.dot_dimension_numbers<[1], [0], [0], [1], [0, 0, 1, 1], [], []>} : vector<8x8xbf16>, vector<8x16xbf16>, vector<8x16xf32> -> vector<8x16xf32>
    %c1_39 = arith.constant 1 : index
    %c0_40 = arith.constant 0 : index
    %c16_41 = arith.constant 16 : index
    %118 = vector.load %arg3[%c1_39, %c0_40, %c16_41] : memref<2x8x64xf32, #tpu.memory_space<vmem>>, vector<1x8x16xf32>
    %119 = vector.shape_cast %118 : vector<1x8x16xf32> to vector<8x16xf32>
    %120 = vector.shape_cast %117 : vector<8x16xf32> to vector<1x8x16xf32>
    tpu.vector_store %arg3[%c1_39, %c0_40, %c16_41], %120 {strides = array<i32>} : memref<2x8x64xf32, #tpu.memory_space<vmem>>, vector<1x8x16xf32>,
    %121 = vector.extract_strided_slice %82 {offsets = [0, 32], sizes = [8, 16], strides = [1, 1]} : vector<8x192xbf16> to vector<8x16xbf16>
    %122 = vector.extract_strided_slice %82 {offsets = [0, 96], sizes = [8, 16], strides = [1, 1]} : vector<8x192xbf16> to vector<8x16xbf16>
    %123 = vector.extract_strided_slice %82 {offsets = [0, 160], sizes = [8, 16], strides = [1, 1]} : vector<8x192xbf16> to vector<8x16xbf16>
    %cst_42 = arith.constant dense<0.000000e+00> : vector<8x8xf32>
    %124 = tpu.matmul %121, %122, %cst_42 {dimension_numbers = #tpu.dot_dimension_numbers<[1], [1], [0], [0], [0, 0, 1, 0], [], []>} : vector<8x16xbf16>, vector<8x16xbf16>, vector<8x8xf32> -> vector<8x8xf32>
    %cst_43 = arith.constant dense<0xFF800000> : vector<8xf32>
    %125 = vector.multi_reduction <maximumf>, %124, %cst_43 [1] : vector<8x8xf32> to vector<8xf32>
    %126 = vector.shape_cast %125 : vector<8xf32> to vector<8x1xf32>
    %127 = vector.broadcast %126 : vector<8x1xf32> to vector<8x8xf32>
    %128 = arith.subf %124, %127 : vector<8x8xf32>
    %129 = math.exp %128 : vector<8x8xf32>
    %cst_44 = arith.constant dense<0.000000e+00> : vector<8xf32>
    %130 = vector.multi_reduction <add>, %129, %cst_44 [1] : vector<8x8xf32> to vector<8xf32>
    %131 = vector.shape_cast %130 : vector<8xf32> to vector<8x1xf32>
    %132 = tpu.reciprocal %131 : vector<8x1xf32> -> vector<8x1xf32>
    %133 = vector.broadcast %132 : vector<8x1xf32> to vector<8x8xf32>
    %134 = arith.mulf %129, %133 : vector<8x8xf32>
    %135 = arith.truncf %134 : vector<8x8xf32> to vector<8x8xbf16>
    %cst_45 = arith.constant dense<0.000000e+00> : vector<8x16xf32>
    %136 = tpu.matmul %135, %123, %cst_45 {dimension_numbers = #tpu.dot_dimension_numbers<[1], [0], [0], [1], [0, 0, 1, 1], [], []>} : vector<8x8xbf16>, vector<8x16xbf16>, vector<8x16xf32> -> vector<8x16xf32>
    %c1_46 = arith.constant 1 : index
    %c0_47 = arith.constant 0 : index
    %c32_48 = arith.constant 32 : index
    %137 = vector.load %arg3[%c1_46, %c0_47, %c32_48] : memref<2x8x64xf32, #tpu.memory_space<vmem>>, vector<1x8x16xf32>
    %138 = vector.shape_cast %137 : vector<1x8x16xf32> to vector<8x16xf32>
    %139 = vector.shape_cast %136 : vector<8x16xf32> to vector<1x8x16xf32>
    tpu.vector_store %arg3[%c1_46, %c0_47, %c32_48], %139 {strides = array<i32>} : memref<2x8x64xf32, #tpu.memory_space<vmem>>, vector<1x8x16xf32>,
    %140 = vector.extract_strided_slice %82 {offsets = [0, 48], sizes = [8, 16], strides = [1, 1]} : vector<8x192xbf16> to vector<8x16xbf16>
    %141 = vector.extract_strided_slice %82 {offsets = [0, 112], sizes = [8, 16], strides = [1, 1]} : vector<8x192xbf16> to vector<8x16xbf16>
    %142 = vector.extract_strided_slice %82 {offsets = [0, 176], sizes = [8, 16], strides = [1, 1]} : vector<8x192xbf16> to vector<8x16xbf16>
    %cst_49 = arith.constant dense<0.000000e+00> : vector<8x8xf32>
    %143 = tpu.matmul %140, %141, %cst_49 {dimension_numbers = #tpu.dot_dimension_numbers<[1], [1], [0], [0], [0, 0, 1, 0], [], []>} : vector<8x16xbf16>, vector<8x16xbf16>, vector<8x8xf32> -> vector<8x8xf32>
    %cst_50 = arith.constant dense<0xFF800000> : vector<8xf32>
    %144 = vector.multi_reduction <maximumf>, %143, %cst_50 [1] : vector<8x8xf32> to vector<8xf32>
    %145 = vector.shape_cast %144 : vector<8xf32> to vector<8x1xf32>
    %146 = vector.broadcast %145 : vector<8x1xf32> to vector<8x8xf32>
    %147 = arith.subf %143, %146 : vector<8x8xf32>
    %148 = math.exp %147 : vector<8x8xf32>
    %cst_51 = arith.constant dense<0.000000e+00> : vector<8xf32>
    %149 = vector.multi_reduction <add>, %148, %cst_51 [1] : vector<8x8xf32> to vector<8xf32>
    %150 = vector.shape_cast %149 : vector<8xf32> to vector<8x1xf32>
    %151 = tpu.reciprocal %150 : vector<8x1xf32> -> vector<8x1xf32>
    %152 = vector.broadcast %151 : vector<8x1xf32> to vector<8x8xf32>
    %153 = arith.mulf %148, %152 : vector<8x8xf32>
    %154 = arith.truncf %153 : vector<8x8xf32> to vector<8x8xbf16>
    %cst_52 = arith.constant dense<0.000000e+00> : vector<8x16xf32>
    %155 = tpu.matmul %154, %142, %cst_52 {dimension_numbers = #tpu.dot_dimension_numbers<[1], [0], [0], [1], [0, 0, 1, 1], [], []>} : vector<8x8xbf16>, vector<8x16xbf16>, vector<8x16xf32> -> vector<8x16xf32>
    %c1_53 = arith.constant 1 : index
    %c0_54 = arith.constant 0 : index
    %c48_55 = arith.constant 48 : index
    %156 = vector.load %arg3[%c1_53, %c0_54, %c48_55] : memref<2x8x64xf32, #tpu.memory_space<vmem>>, vector<1x8x16xf32>
    %157 = vector.shape_cast %156 : vector<1x8x16xf32> to vector<8x16xf32>
    %158 = vector.shape_cast %155 : vector<8x16xf32> to vector<1x8x16xf32>
    tpu.vector_store %arg3[%c1_53, %c0_54, %c48_55], %158 {strides = array<i32>} : memref<2x8x64xf32, #tpu.memory_space<vmem>>, vector<1x8x16xf32>,
    return
  }
  func.func @transform_0(%arg0: i32) -> (i32, i32, i32) {
    %c0_i32 = arith.constant 0 : i32
    %c0_i32_0 = arith.constant 0 : i32
    %c0_i32_1 = arith.constant 0 : i32
    return %arg0, %c0_i32, %c0_i32_0 : i32, i32, i32
  }
  func.func @transform_1(%arg0: i32) -> (i32, i32) {
    %c0_i32 = arith.constant 0 : i32
    %c0_i32_0 = arith.constant 0 : i32
    %c0_i32_1 = arith.constant 0 : i32
    return %c0_i32, %c0_i32_0 : i32, i32
  }
  func.func @transform_2(%arg0: i32) -> (i32, i32, i32) {
    %c0_i32 = arith.constant 0 : i32
    %c0_i32_0 = arith.constant 0 : i32
    %c0_i32_1 = arith.constant 0 : i32
    return %arg0, %c0_i32, %c0_i32_0 : i32, i32, i32
  }
}

</mosaic_0001>

<llo_original>
// kernel: tpu_custom_call.1
$region0: #{tpu_custom_call.1}
  #allocation0 [shape = 'u32[]', space=smem, size = 0x4, offset = 0x4, fixed_abs, tag = 'smem constant byte address 0x4 - core index']
  #allocation1 [shape = 'u32[144,128]{1,0:T(1,128)}', space=vmem, size = 0x12000, scoped, tag = 'internal scratch']
  %s0 = inlined_call_operand.hbm [shape: bf16[2,8,32], index: 0, kind: input, shape index: {}]
  %s1 = inlined_call_operand.hbm [shape: bf16[32,192], index: 1, kind: input, shape index: {}]
  %s2 = inlined_call_operand.hbm [shape: f32[2,8,64], index: 2, kind: output, shape index: {}]
  %s3 = sld [smem:[#allocation0]]
  $region26: #{tpu_custom_call.1} parent=0
    _
  %s5 = ssub.s32 1, %s3
  %s6 = scalar_select 0, %s5, %s3
  $region1: #{tpu_custom_call.1} parent=0
    #allocation2 [shape = 'u8[4096]{0}', space=vmem, size = 0x1000, scoped, tag = 'input window, operand 0, single buffered']
    #allocation3 [shape = 's32[1]{0}', space=sflag, size = 0x4, scoped, tag = 'scoped memory for tpu_custom_call.1']
    #allocation4 [shape = 's32[1]{0}', space=sflag, size = 0x4, scoped, tag = 'scoped memory for tpu_custom_call.1']
    #allocation5 [shape = 'u8[16384]{0}', space=vmem, size = 0x4000, scoped, tag = 'input window, operand 1, single buffered']
    #allocation6 [shape = 's32[1]{0}', space=sflag, size = 0x4, scoped, tag = 'scoped memory for tpu_custom_call.1']
    #allocation7 [shape = 'u8[8192]{0}', space=vmem, size = 0x2000, scoped, tag = 'output window, operand 0, single buffered']
    %7 = vsyncpa [#allocation3], 0
    %8 = vsyncpa [#allocation6], 0
    %9 = vsyncpa [#allocation4], 0
    // Predicated region
    $region2: #{tpu_custom_call.1} parent=1 // pred_check
      _
    $region3: #{tpu_custom_call.1} parent=1 // pred_check_branch
      %11 = sbr.rel (0) target = $region5
    $region4: #{tpu_custom_call.1} parent=1 // pred_region
      %s13 = ssub.s32 128, 128
      %14 = vsyncadd [#allocation3], %s13
      %s15 = sshll.u32 [#allocation2], 4
      %s16 = int_to_ptr.vmem [resolvable:$true] %s15
      %21 = dma.hbm_to_vmem [thread:$0]  %s0, 128, %s16, [#allocation3], 64, 64, 4
    $region5: #{tpu_custom_call.1} parent=1 // pred_fallthru
      _
    // Predicated region
    $region6: #{tpu_custom_call.1} parent=1 // pred_check
      _
    $region7: #{tpu_custom_call.1} parent=1 // pred_check_branch
      %23 = sbr.rel (0) target = $region9
    $region8: #{tpu_custom_call.1} parent=1 // pred_region
      %s25 = ssub.s32 512, 512
      %26 = vsyncadd [#allocation6], %s25
      %s27 = sshll.u32 [#allocation5], 4
      %s28 = int_to_ptr.vmem [resolvable:$true] %s27
      %33 = dma.hbm_to_vmem [thread:$0]  %s1, 512, %s28, [#allocation6], 128, 128, 8
    $region9: #{tpu_custom_call.1} parent=1 // pred_fallthru
      _
    // Predicated region
    $region10: #{tpu_custom_call.1} parent=1 // pred_check
      _
    $region11: #{tpu_custom_call.1} parent=1 // pred_check_branch
      %35 = sbr.rel (0) target = $region13
    $region12: #{tpu_custom_call.1} parent=1 // pred_region
      %36 = dma.done [#allocation3], 128
    $region13: #{tpu_custom_call.1} parent=1 // pred_fallthru
      _
    // Predicated region
    $region14: #{tpu_custom_call.1} parent=1 // pred_check
      _
    $region15: #{tpu_custom_call.1} parent=1 // pred_check_branch
      %38 = sbr.rel (0) target = $region17
    $region16: #{tpu_custom_call.1} parent=1 // pred_region
      %39 = dma.done [#allocation6], 512
    $region17: #{tpu_custom_call.1} parent=1 // pred_fallthru
      _
    %v41 = vld [vmem:[#allocation2] sm:$0xf]
    %v42 = vld [vmem:[#allocation2 + $0x4] sm:$0xf]
    %v43 = vld [vmem:[#allocation5] sm:$0xff]
    %v44 = vld [vmem:[#allocation5 + $0x8] sm:$0xff]
    %v45 = vld [vmem:[#allocation5 + $0x10] sm:$0xff]
    %v46 = vld [vmem:[#allocation5 + $0x18] sm:$0xff]
    %v49 = vunpack.c.l.b16 %v41
    %v50 = vunpack.c.l.b16 %v42
    %v51 = vpack.c.b16 %v50, %v49
    %v56 = vunpack.c.l.b16 %v43
    %v57 = vunpack.c.h.b16 %v43
    %v58 = vunpack.c.l.b16 %v44
    %v59 = vunpack.c.h.b16 %v44
    %v60 = vunpack.c.l.b16 %v45
    %v61 = vunpack.c.h.b16 %v45
    %v62 = vunpack.c.l.b16 %v46
    %v63 = vunpack.c.h.b16 %v46
    %v64 = vpack.c.b16 %v58, %v56
    %v65 = vpack.c.b16 %v59, %v57
    %v66 = vpack.c.b16 %v62, %v60
    %v67 = vpack.c.b16 %v63, %v61
    %vm72 = vcmask 261120
    %v74 = vsel %vm72, %v51, 0
    %76 = vmatprep.subr.bf16.mxu0 %v65
    %77 = vmatpush1.bf16.msra.mxu0 %v64
    %78 = vmatprep.subr.bf16.mxu0 %v67
    %79 = vmatpush1.bf16.msra.mxu0 %v66
    %80 = vmatprep.subr.bf16.mxu0 0
    %81 = vmatpush1.bf16.msra.mxu0 0
    %82 = vmatprep.subr.bf16.mxu0 0
    %83 = vmatpush1.bf16.msra.mxu0 0
    %84 = vmatprep.subr.bf16.mxu0 0
    %85 = vmatpush1.bf16.msra.mxu0 0
    %86 = vmatprep.subr.bf16.mxu0 0
    %87 = vmatpush1.bf16.msra.mxu0 0
    %88 = vmatprep.subr.bf16.mxu0 0
    %89 = vmatpush1.bf16.msra.mxu0 0
    %90 = vmatprep.subr.bf16.mxu0 0
    %91 = vmatpush1.bf16.msra.mxu0 0
    %92 = vmatprep.subr.bf16.mxu0 0
    %93 = vmatpush1.bf16.msra.mxu0 0
    %94 = vmatprep.subr.bf16.mxu0 0
    %95 = vmatpush1.bf16.msra.mxu0 0
    %96 = vmatprep.subr.bf16.mxu0 0
    %97 = vmatpush1.bf16.msra.mxu0 0
    %98 = vmatprep.subr.bf16.mxu0 0
    %99 = vmatpush1.bf16.msra.mxu0 0
    %100 = vmatprep.subr.bf16.mxu0 0
    %101 = vmatpush1.bf16.msra.mxu0 0
    %102 = vmatprep.subr.bf16.mxu0 0
    %103 = vmatpush1.bf16.msra.mxu0 0
    %104 = vmatprep.subr.bf16.mxu0 0
    %105 = vmatpush1.bf16.msra.mxu0 0
    %106 = vmatprep.subr.bf16.mxu0 0
    %107 = vmatpush1.bf16.msra.mxu0 0
    %108 = vmatprep.mubr.bf16.mxu0 0
    %109 = vmatmul.mubr.bf16.gmra.mrb[0].mxu0 %v74
    %v110 = vpop.f32.mrb[0].mxu0
    %v111 = vadd.f32 0.0, %v110
    %v112 = vpop.f32.mrb[0].mxu0
    %v113 = vadd.f32 0.0, %v112
    %v114 = vpop.f32.mrb[0].mxu0
    %v115 = vadd.f32 0.0, %v114
    %v116 = vpop.f32.mrb[0].mxu0
    %v117 = vadd.f32 0.0, %v116
    %118 = vdwg.mxu0
    %v119 = vpack.c.bf16 %v115, %v111
    %v120 = vpack.c.bf16 %v117, %v113
    %122 = vrot.lane.b32.xlu0 %v119, 64
    %v123 = vpop.permute.xlu0 %122
    %vm124 = vcmask 130048
    %v126 = vsel %vm124, %v119, 0
    %v129 = vsel %vm124, %v123, 0
    %131 = vmatprep.subr.bf16.mxu0 0
    %132 = vmatpush1.bf16.xpose.msra.mxu0 %v129
    %133 = vmatprep.subr.bf16.mxu0 0
    %134 = vmatpush1.bf16.xpose.msra.mxu0 0
    %135 = vmatprep.subr.bf16.mxu0 0
    %136 = vmatpush1.bf16.xpose.msra.mxu0 0
    %137 = vmatprep.subr.bf16.mxu0 0
    %138 = vmatpush1.bf16.xpose.msra.mxu0 0
    %139 = vmatprep.subr.bf16.mxu0 0
    %140 = vmatpush1.bf16.xpose.msra.mxu0 0
    %141 = vmatprep.subr.bf16.mxu0 0
    %142 = vmatpush1.bf16.xpose.msra.mxu0 0
    %143 = vmatprep.subr.bf16.mxu0 0
    %144 = vmatpush1.bf16.xpose.msra.mxu0 0
    %145 = vmatprep.subr.bf16.mxu0 0
    %146 = vmatpush1.bf16.xpose.msra.mxu0 0
    %147 = vmatprep.subr.bf16.mxu0 0
    %148 = vmatpush1.bf16.xpose.msra.mxu0 0
    %149 = vmatprep.subr.bf16.mxu0 0
    %150 = vmatpush1.bf16.xpose.msra.mxu0 0
    %151 = vmatprep.subr.bf16.mxu0 0
    %152 = vmatpush1.bf16.xpose.msra.mxu0 0
    %153 = vmatprep.subr.bf16.mxu0 0
    %154 = vmatpush1.bf16.xpose.msra.mxu0 0
    %155 = vmatprep.subr.bf16.mxu0 0
    %156 = vmatpush1.bf16.xpose.msra.mxu0 0
    %157 = vmatprep.subr.bf16.mxu0 0
    %158 = vmatpush1.bf16.xpose.msra.mxu0 0
    %159 = vmatprep.subr.bf16.mxu0 0
    %160 = vmatpush1.bf16.xpose.msra.mxu0 0
    %161 = vmatprep.subr.bf16.mxu0 0
    %162 = vmatpush1.bf16.xpose.msra.mxu0 0
    %163 = vmatprep.mubr.bf16.mxu0 0
    %164 = vmatmul.mubr.bf16.gmra.mrb[0].mxu0 %v126
    %v165 = vpop.f32.mrb[0].mxu0
    %v166 = vadd.f32 0.0, %v165
    %v167 = vpop.f32.mrb[0].mxu0
    %v168 = vpop.f32.mrb[0].mxu0
    %v169 = vpop.f32.mrb[0].mxu0
    %170 = vdwg.mxu0
    %vm171 = vcmask 64512
    %v172 = vsel %vm171, %v166, -inf
    %173 = vmax.xlane.f32.xlu0 %v172
    %v174 = vpop.xlane.xlu0 %173
    %v175 = vsub.f32 %v166, %v174
    %v176 = vmul.f32 %v175, 1.442695
    %v177 = vpow.pop %v176
    %v178 = vsel %vm171, %v177, 0.0
    %179 = vadd.xlane.f32.xlu0 %v178
    %v180 = vpop.xlane.xlu0 %179
    %v181 = vrcp.pop %v180
    %v182 = vmul.f32 %v177, %v181
    %v183 = vpack.c.bf16 %v182, %v182
    %v185 = vsel %vm171, %v183, 0
    %vm187 = vcmask 1043456
    %v189 = vsel %vm187, %v120, 0
    %191 = vmatprep.subr.bf16.mxu0 0
    %192 = vmatpush1.bf16.msra.mxu0 %v189
    %193 = vmatprep.subr.bf16.mxu0 0
    %194 = vmatpush1.bf16.msra.mxu0 0
    %195 = vmatprep.subr.bf16.mxu0 0
    %196 = vmatpush1.bf16.msra.mxu0 0
    %197 = vmatprep.subr.bf16.mxu0 0
    %198 = vmatpush1.bf16.msra.mxu0 0
    %199 = vmatprep.subr.bf16.mxu0 0
    %200 = vmatpush1.bf16.msra.mxu0 0
    %201 = vmatprep.subr.bf16.mxu0 0
    %202 = vmatpush1.bf16.msra.mxu0 0
    %203 = vmatprep.subr.bf16.mxu0 0
    %204 = vmatpush1.bf16.msra.mxu0 0
    %205 = vmatprep.subr.bf16.mxu0 0
    %206 = vmatpush1.bf16.msra.mxu0 0
    %207 = vmatprep.subr.bf16.mxu0 0
    %208 = vmatpush1.bf16.msra.mxu0 0
    %209 = vmatprep.subr.bf16.mxu0 0
    %210 = vmatpush1.bf16.msra.mxu0 0
    %211 = vmatprep.subr.bf16.mxu0 0
    %212 = vmatpush1.bf16.msra.mxu0 0
    %213 = vmatprep.subr.bf16.mxu0 0
    %214 = vmatpush1.bf16.msra.mxu0 0
    %215 = vmatprep.subr.bf16.mxu0 0
    %216 = vmatpush1.bf16.msra.mxu0 0
    %217 = vmatprep.subr.bf16.mxu0 0
    %218 = vmatpush1.bf16.msra.mxu0 0
    %219 = vmatprep.subr.bf16.mxu0 0
    %220 = vmatpush1.bf16.msra.mxu0 0
    %221 = vmatprep.subr.bf16.mxu0 0
    %222 = vmatpush1.bf16.msra.mxu0 0
    %223 = vmatprep.mubr.bf16.mxu0 0
    %224 = vmatmul.mubr.bf16.gmra.mrb[0].mxu0 %v185
    %v225 = vpop.f32.mrb[0].mxu0
    %v226 = vadd.f32 0.0, %v225
    %v227 = vpop.f32.mrb[0].mxu0
    %v228 = vpop.f32.mrb[0].mxu0
    %v229 = vpop.f32.mrb[0].mxu0
    %230 = vdwg.mxu0
    %231 = vst.msk [vmem:[#allocation7] sm:$0xff] %vm124, %v226
    %232 = vrot.lane.b32.xlu0 %v119, 112
    %v233 = vpop.permute.xlu0 %232
    %234 = vrot.lane.b32.xlu0 %v119, 48
    %v235 = vpop.permute.xlu0 %234
    %v237 = vsel %vm124, %v233, 0
    %v240 = vsel %vm124, %v235, 0
    %242 = vmatprep.subr.bf16.mxu0 0
    %243 = vmatpush1.bf16.xpose.msra.mxu0 %v240
    %244 = vmatprep.subr.bf16.mxu0 0
    %245 = vmatpush1.bf16.xpose.msra.mxu0 0
    %246 = vmatprep.subr.bf16.mxu0 0
    %247 = vmatpush1.bf16.xpose.msra.mxu0 0
    %248 = vmatprep.subr.bf16.mxu0 0
    %249 = vmatpush1.bf16.xpose.msra.mxu0 0
    %250 = vmatprep.subr.bf16.mxu0 0
    %251 = vmatpush1.bf16.xpose.msra.mxu0 0
    %252 = vmatprep.subr.bf16.mxu0 0
    %253 = vmatpush1.bf16.xpose.msra.mxu0 0
    %254 = vmatprep.subr.bf16.mxu0 0
    %255 = vmatpush1.bf16.xpose.msra.mxu0 0
    %256 = vmatprep.subr.bf16.mxu0 0
    %257 = vmatpush1.bf16.xpose.msra.mxu0 0
    %258 = vmatprep.subr.bf16.mxu0 0
    %259 = vmatpush1.bf16.xpose.msra.mxu0 0
    %260 = vmatprep.subr.bf16.mxu0 0
    %261 = vmatpush1.bf16.xpose.msra.mxu0 0
    %262 = vmatprep.subr.bf16.mxu0 0
    %263 = vmatpush1.bf16.xpose.msra.mxu0 0
    %264 = vmatprep.subr.bf16.mxu0 0
    %265 = vmatpush1.bf16.xpose.msra.mxu0 0
    %266 = vmatprep.subr.bf16.mxu0 0
    %267 = vmatpush1.bf16.xpose.msra.mxu0 0
    %268 = vmatprep.subr.bf16.mxu0 0
    %269 = vmatpush1.bf16.xpose.msra.mxu0 0
    %270 = vmatprep.subr.bf16.mxu0 0
    %271 = vmatpush1.bf16.xpose.msra.mxu0 0
    %272 = vmatprep.subr.bf16.mxu0 0
    %273 = vmatpush1.bf16.xpose.msra.mxu0 0
    %274 = vmatprep.mubr.bf16.mxu0 0
    %275 = vmatmul.mubr.bf16.gmra.mrb[0].mxu0 %v237
    %v276 = vpop.f32.mrb[0].mxu0
    %v277 = vadd.f32 0.0, %v276
    %v278 = vpop.f32.mrb[0].mxu0
    %v279 = vpop.f32.mrb[0].mxu0
    %v280 = vpop.f32.mrb[0].mxu0
    %281 = vdwg.mxu0
    %v282 = vsel %vm171, %v277, -inf
    %283 = vmax.xlane.f32.xlu0 %v282
    %v284 = vpop.xlane.xlu0 %283
    %v285 = vsub.f32 %v277, %v284
    %v286 = vmul.f32 %v285, 1.442695
    %v287 = vpow.pop %v286
    %v288 = vsel %vm171, %v287, 0.0
    %289 = vadd.xlane.f32.xlu0 %v288
    %v290 = vpop.xlane.xlu0 %289
    %v291 = vrcp.pop %v290
    %v292 = vmul.f32 %v287, %v291
    %v293 = vpack.c.bf16 %v292, %v292
    %295 = vrot.lane.b32.xlu0 %v120, 112
    %v296 = vpop.permute.xlu0 %295
    %v298 = vsel %vm171, %v293, 0
    %v301 = vsel %vm187, %v296, 0
    %303 = vmatprep.subr.bf16.mxu0 0
    %304 = vmatpush1.bf16.msra.mxu0 %v301
    %305 = vmatprep.subr.bf16.mxu0 0
    %306 = vmatpush1.bf16.msra.mxu0 0
    %307 = vmatprep.subr.bf16.mxu0 0
    %308 = vmatpush1.bf16.msra.mxu0 0
    %309 = vmatprep.subr.bf16.mxu0 0
    %310 = vmatpush1.bf16.msra.mxu0 0
    %311 = vmatprep.subr.bf16.mxu0 0
    %312 = vmatpush1.bf16.msra.mxu0 0
    %313 = vmatprep.subr.bf16.mxu0 0
    %314 = vmatpush1.bf16.msra.mxu0 0
    %315 = vmatprep.subr.bf16.mxu0 0
    %316 = vmatpush1.bf16.msra.mxu0 0
    %317 = vmatprep.subr.bf16.mxu0 0
    %318 = vmatpush1.bf16.msra.mxu0 0
    %319 = vmatprep.subr.bf16.mxu0 0
    %320 = vmatpush1.bf16.msra.mxu0 0
    %321 = vmatprep.subr.bf16.mxu0 0
    %322 = vmatpush1.bf16.msra.mxu0 0
    %323 = vmatprep.subr.bf16.mxu0 0
    %324 = vmatpush1.bf16.msra.mxu0 0
    %325 = vmatprep.subr.bf16.mxu0 0
    %326 = vmatpush1.bf16.msra.mxu0 0
    %327 = vmatprep.subr.bf16.mxu0 0
    %328 = vmatpush1.bf16.msra.mxu0 0
    %329 = vmatprep.subr.bf16.mxu0 0
    %330 = vmatpush1.bf16.msra.mxu0 0
    %331 = vmatprep.subr.bf16.mxu0 0
    %332 = vmatpush1.bf16.msra.mxu0 0
    %333 = vmatprep.subr.bf16.mxu0 0
    %334 = vmatpush1.bf16.msra.mxu0 0
    %335 = vmatprep.mubr.bf16.mxu0 0
    %336 = vmatmul.mubr.bf16.gmra.mrb[0].mxu0 %v298
    %v337 = vpop.f32.mrb[0].mxu0
    %v338 = vadd.f32 0.0, %v337
    %v339 = vpop.f32.mrb[0].mxu0
    %v340 = vpop.f32.mrb[0].mxu0
    %v341 = vpop.f32.mrb[0].mxu0
    %342 = vdwg.mxu0
    %344 = vrot.lane.b32.xlu0 %v338, 16
    %v345 = vpop.permute.xlu0 %344
    %vm347 = vcmask 261248
    %348 = vst.msk [vmem:[#allocation7] sm:$0xff] %vm347, %v345
    %349 = vrot.lane.b32.xlu0 %v119, 96
    %v350 = vpop.permute.xlu0 %349
    %351 = vrot.lane.b32.xlu0 %v119, 32
    %v352 = vpop.permute.xlu0 %351
    %v354 = vsel %vm124, %v350, 0
    %v357 = vsel %vm124, %v352, 0
    %359 = vmatprep.subr.bf16.mxu0 0
    %360 = vmatpush1.bf16.xpose.msra.mxu0 %v357
    %361 = vmatprep.subr.bf16.mxu0 0
    %362 = vmatpush1.bf16.xpose.msra.mxu0 0
    %363 = vmatprep.subr.bf16.mxu0 0
    %364 = vmatpush1.bf16.xpose.msra.mxu0 0
    %365 = vmatprep.subr.bf16.mxu0 0
    %366 = vmatpush1.bf16.xpose.msra.mxu0 0
    %367 = vmatprep.subr.bf16.mxu0 0
    %368 = vmatpush1.bf16.xpose.msra.mxu0 0
    %369 = vmatprep.subr.bf16.mxu0 0
    %370 = vmatpush1.bf16.xpose.msra.mxu0 0
    %371 = vmatprep.subr.bf16.mxu0 0
    %372 = vmatpush1.bf16.xpose.msra.mxu0 0
    %373 = vmatprep.subr.bf16.mxu0 0
    %374 = vmatpush1.bf16.xpose.msra.mxu0 0
    %375 = vmatprep.subr.bf16.mxu0 0
    %376 = vmatpush1.bf16.xpose.msra.mxu0 0
    %377 = vmatprep.subr.bf16.mxu0 0
    %378 = vmatpush1.bf16.xpose.msra.mxu0 0
    %379 = vmatprep.subr.bf16.mxu0 0
    %380 = vmatpush1.bf16.xpose.msra.mxu0 0
    %381 = vmatprep.subr.bf16.mxu0 0
    %382 = vmatpush1.bf16.xpose.msra.mxu0 0
    %383 = vmatprep.subr.bf16.mxu0 0
    %384 = vmatpush1.bf16.xpose.msra.mxu0 0
    %385 = vmatprep.subr.bf16.mxu0 0
    %386 = vmatpush1.bf16.xpose.msra.mxu0 0
    %387 = vmatprep.subr.bf16.mxu0 0
    %388 = vmatpush1.bf16.xpose.msra.mxu0 0
    %389 = vmatprep.subr.bf16.mxu0 0
    %390 = vmatpush1.bf16.xpose.msra.mxu0 0
    %391 = vmatprep.mubr.bf16.mxu0 0
    %392 = vmatmul.mubr.bf16.gmra.mrb[0].mxu0 %v354
    %v393 = vpop.f32.mrb[0].mxu0
    %v394 = vadd.f32 0.0, %v393
    %v395 = vpop.f32.mrb[0].mxu0
    %v396 = vpop.f32.mrb[0].mxu0
    %v397 = vpop.f32.mrb[0].mxu0
    %398 = vdwg.mxu0
    %v399 = vsel %vm171, %v394, -inf
    %400 = vmax.xlane.f32.xlu0 %v399
    %v401 = vpop.xlane.xlu0 %400
    %v402 = vsub.f32 %v394, %v401
    %v403 = vmul.f32 %v402, 1.442695
    %v404 = vpow.pop %v403
    %v405 = vsel %vm171, %v404, 0.0
    %406 = vadd.xlane.f32.xlu0 %v405
    %v407 = vpop.xlane.xlu0 %406
    %v408 = vrcp.pop %v407
    %v409 = vmul.f32 %v404, %v408
    %v410 = vpack.c.bf16 %v409, %v409
    %411 = vrot.lane.b32.xlu0 %v120, 96
    %v412 = vpop.permute.xlu0 %411
    %v414 = vsel %vm171, %v410, 0
    %v417 = vsel %vm187, %v412, 0
    %419 = vmatprep.subr.bf16.mxu0 0
    %420 = vmatpush1.bf16.msra.mxu0 %v417
    %421 = vmatprep.subr.bf16.mxu0 0
    %422 = vmatpush1.bf16.msra.mxu0 0
    %423 = vmatprep.subr.bf16.mxu0 0
    %424 = vmatpush1.bf16.msra.mxu0 0
    %425 = vmatprep.subr.bf16.mxu0 0
    %426 = vmatpush1.bf16.msra.mxu0 0
    %427 = vmatprep.subr.bf16.mxu0 0
    %428 = vmatpush1.bf16.msra.mxu0 0
    %429 = vmatprep.subr.bf16.mxu0 0
    %430 = vmatpush1.bf16.msra.mxu0 0
    %431 = vmatprep.subr.bf16.mxu0 0
    %432 = vmatpush1.bf16.msra.mxu0 0
    %433 = vmatprep.subr.bf16.mxu0 0
    %434 = vmatpush1.bf16.msra.mxu0 0
    %435 = vmatprep.subr.bf16.mxu0 0
    %436 = vmatpush1.bf16.msra.mxu0 0
    %437 = vmatprep.subr.bf16.mxu0 0
    %438 = vmatpush1.bf16.msra.mxu0 0
    %439 = vmatprep.subr.bf16.mxu0 0
    %440 = vmatpush1.bf16.msra.mxu0 0
    %441 = vmatprep.subr.bf16.mxu0 0
    %442 = vmatpush1.bf16.msra.mxu0 0
    %443 = vmatprep.subr.bf16.mxu0 0
    %444 = vmatpush1.bf16.msra.mxu0 0
    %445 = vmatprep.subr.bf16.mxu0 0
    %446 = vmatpush1.bf16.msra.mxu0 0
    %447 = vmatprep.subr.bf16.mxu0 0
    %448 = vmatpush1.bf16.msra.mxu0 0
    %449 = vmatprep.subr.bf16.mxu0 0
    %450 = vmatpush1.bf16.msra.mxu0 0
    %451 = vmatprep.mubr.bf16.mxu0 0
    %452 = vmatmul.mubr.bf16.gmra.mrb[0].mxu0 %v414
    %v453 = vpop.f32.mrb[0].mxu0
    %v454 = vadd.f32 0.0, %v453
    %v455 = vpop.f32.mrb[0].mxu0
    %v456 = vpop.f32.mrb[0].mxu0
    %v457 = vpop.f32.mrb[0].mxu0
    %458 = vdwg.mxu0
    %460 = vrot.lane.b32.xlu0 %v454, 32
    %v461 = vpop.permute.xlu0 %460
    %vm463 = vcmask 392448
    %464 = vst.msk [vmem:[#allocation7] sm:$0xff] %vm463, %v461
    %465 = vrot.lane.b32.xlu0 %v119, 80
    %v466 = vpop.permute.xlu0 %465
    %467 = vrot.lane.b32.xlu0 %v119, 16
    %v468 = vpop.permute.xlu0 %467
    %v470 = vsel %vm124, %v466, 0
    %v473 = vsel %vm124, %v468, 0
    %475 = vmatprep.subr.bf16.mxu0 0
    %476 = vmatpush1.bf16.xpose.msra.mxu0 %v473
    %477 = vmatprep.subr.bf16.mxu0 0
    %478 = vmatpush1.bf16.xpose.msra.mxu0 0
    %479 = vmatprep.subr.bf16.mxu0 0
    %480 = vmatpush1.bf16.xpose.msra.mxu0 0
    %481 = vmatprep.subr.bf16.mxu0 0
    %482 = vmatpush1.bf16.xpose.msra.mxu0 0
    %483 = vmatprep.subr.bf16.mxu0 0
    %484 = vmatpush1.bf16.xpose.msra.mxu0 0
    %485 = vmatprep.subr.bf16.mxu0 0
    %486 = vmatpush1.bf16.xpose.msra.mxu0 0
    %487 = vmatprep.subr.bf16.mxu0 0
    %488 = vmatpush1.bf16.xpose.msra.mxu0 0
    %489 = vmatprep.subr.bf16.mxu0 0
    %490 = vmatpush1.bf16.xpose.msra.mxu0 0
    %491 = vmatprep.subr.bf16.mxu0 0
    %492 = vmatpush1.bf16.xpose.msra.mxu0 0
    %493 = vmatprep.subr.bf16.mxu0 0
    %494 = vmatpush1.bf16.xpose.msra.mxu0 0
    %495 = vmatprep.subr.bf16.mxu0 0
    %496 = vmatpush1.bf16.xpose.msra.mxu0 0
    %497 = vmatprep.subr.bf16.mxu0 0
    %498 = vmatpush1.bf16.xpose.msra.mxu0 0
    %499 = vmatprep.subr.bf16.mxu0 0
    %500 = vmatpush1.bf16.xpose.msra.mxu0 0
    %501 = vmatprep.subr.bf16.mxu0 0
    %502 = vmatpush1.bf16.xpose.msra.mxu0 0
    %503 = vmatprep.subr.bf16.mxu0 0
    %504 = vmatpush1.bf16.xpose.msra.mxu0 0
    %505 = vmatprep.subr.bf16.mxu0 0
    %506 = vmatpush1.bf16.xpose.msra.mxu0 0
    %507 = vmatprep.mubr.bf16.mxu0 0
    %508 = vmatmul.mubr.bf16.gmra.mrb[0].mxu0 %v470
    %v509 = vpop.f32.mrb[0].mxu0
    %v510 = vadd.f32 0.0, %v509
    %v511 = vpop.f32.mrb[0].mxu0
    %v512 = vpop.f32.mrb[0].mxu0
    %v513 = vpop.f32.mrb[0].mxu0
    %514 = vdwg.mxu0
    %v515 = vsel %vm171, %v510, -inf
    %516 = vmax.xlane.f32.xlu0 %v515
    %v517 = vpop.xlane.xlu0 %516
    %v518 = vsub.f32 %v510, %v517
    %v519 = vmul.f32 %v518, 1.442695
    %v520 = vpow.pop %v519
    %v521 = vsel %vm171, %v520, 0.0
    %522 = vadd.xlane.f32.xlu0 %v521
    %v523 = vpop.xlane.xlu0 %522
    %v524 = vrcp.pop %v523
    %v525 = vmul.f32 %v520, %v524
    %v526 = vpack.c.bf16 %v525, %v525
    %527 = vrot.lane.b32.xlu0 %v120, 80
    %v528 = vpop.permute.xlu0 %527
    %v530 = vsel %vm171, %v526, 0
    %v533 = vsel %vm187, %v528, 0
    %535 = vmatprep.subr.bf16.mxu0 0
    %536 = vmatpush1.bf16.msra.mxu0 %v533
    %537 = vmatprep.subr.bf16.mxu0 0
    %538 = vmatpush1.bf16.msra.mxu0 0
    %539 = vmatprep.subr.bf16.mxu0 0
    %540 = vmatpush1.bf16.msra.mxu0 0
    %541 = vmatprep.subr.bf16.mxu0 0
    %542 = vmatpush1.bf16.msra.mxu0 0
    %543 = vmatprep.subr.bf16.mxu0 0
    %544 = vmatpush1.bf16.msra.mxu0 0
    %545 = vmatprep.subr.bf16.mxu0 0
    %546 = vmatpush1.bf16.msra.mxu0 0
    %547 = vmatprep.subr.bf16.mxu0 0
    %548 = vmatpush1.bf16.msra.mxu0 0
    %549 = vmatprep.subr.bf16.mxu0 0
    %550 = vmatpush1.bf16.msra.mxu0 0
    %551 = vmatprep.subr.bf16.mxu0 0
    %552 = vmatpush1.bf16.msra.mxu0 0
    %553 = vmatprep.subr.bf16.mxu0 0
    %554 = vmatpush1.bf16.msra.mxu0 0
    %555 = vmatprep.subr.bf16.mxu0 0
    %556 = vmatpush1.bf16.msra.mxu0 0
    %557 = vmatprep.subr.bf16.mxu0 0
    %558 = vmatpush1.bf16.msra.mxu0 0
    %559 = vmatprep.subr.bf16.mxu0 0
    %560 = vmatpush1.bf16.msra.mxu0 0
    %561 = vmatprep.subr.bf16.mxu0 0
    %562 = vmatpush1.bf16.msra.mxu0 0
    %563 = vmatprep.subr.bf16.mxu0 0
    %564 = vmatpush1.bf16.msra.mxu0 0
    %565 = vmatprep.subr.bf16.mxu0 0
    %566 = vmatpush1.bf16.msra.mxu0 0
    %567 = vmatprep.mubr.bf16.mxu0 0
    %568 = vmatmul.mubr.bf16.gmra.mrb[0].mxu0 %v530
    %v569 = vpop.f32.mrb[0].mxu0
    %v570 = vadd.f32 0.0, %v569
    %v571 = vpop.f32.mrb[0].mxu0
    %v572 = vpop.f32.mrb[0].mxu0
    %v573 = vpop.f32.mrb[0].mxu0
    %574 = vdwg.mxu0
    %576 = vrot.lane.b32.xlu0 %v570, 48
    %v577 = vpop.permute.xlu0 %576
    %vm579 = vcmask 523648
    %580 = vst.msk [vmem:[#allocation7] sm:$0xff] %vm579, %v577
    %v581 = vrot.slane %v119, 4
    %582 = vrot.lane.b32.xlu0 %v581, 64
    %v583 = vpop.permute.xlu0 %582
    %v585 = vsel %vm124, %v581, 0
    %v588 = vsel %vm124, %v583, 0
    %590 = vmatprep.subr.bf16.mxu0 0
    %591 = vmatpush1.bf16.xpose.msra.mxu0 %v588
    %592 = vmatprep.subr.bf16.mxu0 0
    %593 = vmatpush1.bf16.xpose.msra.mxu0 0
    %594 = vmatprep.subr.bf16.mxu0 0
    %595 = vmatpush1.bf16.xpose.msra.mxu0 0
    %596 = vmatprep.subr.bf16.mxu0 0
    %597 = vmatpush1.bf16.xpose.msra.mxu0 0
    %598 = vmatprep.subr.bf16.mxu0 0
    %599 = vmatpush1.bf16.xpose.msra.mxu0 0
    %600 = vmatprep.subr.bf16.mxu0 0
    %601 = vmatpush1.bf16.xpose.msra.mxu0 0
    %602 = vmatprep.subr.bf16.mxu0 0
    %603 = vmatpush1.bf16.xpose.msra.mxu0 0
    %604 = vmatprep.subr.bf16.mxu0 0
    %605 = vmatpush1.bf16.xpose.msra.mxu0 0
    %606 = vmatprep.subr.bf16.mxu0 0
    %607 = vmatpush1.bf16.xpose.msra.mxu0 0
    %608 = vmatprep.subr.bf16.mxu0 0
    %609 = vmatpush1.bf16.xpose.msra.mxu0 0
    %610 = vmatprep.subr.bf16.mxu0 0
    %611 = vmatpush1.bf16.xpose.msra.mxu0 0
    %612 = vmatprep.subr.bf16.mxu0 0
    %613 = vmatpush1.bf16.xpose.msra.mxu0 0
    %614 = vmatprep.subr.bf16.mxu0 0
    %615 = vmatpush1.bf16.xpose.msra.mxu0 0
    %616 = vmatprep.subr.bf16.mxu0 0
    %617 = vmatpush1.bf16.xpose.msra.mxu0 0
    %618 = vmatprep.subr.bf16.mxu0 0
    %619 = vmatpush1.bf16.xpose.msra.mxu0 0
    %620 = vmatprep.subr.bf16.mxu0 0
    %621 = vmatpush1.bf16.xpose.msra.mxu0 0
    %622 = vmatprep.mubr.bf16.mxu0 0
    %623 = vmatmul.mubr.bf16.gmra.mrb[0].mxu0 %v585
    %v624 = vpop.f32.mrb[0].mxu0
    %v625 = vadd.f32 0.0, %v624
    %v626 = vpop.f32.mrb[0].mxu0
    %v627 = vpop.f32.mrb[0].mxu0
    %v628 = vpop.f32.mrb[0].mxu0
    %629 = vdwg.mxu0
    %v630 = vsel %vm171, %v625, -inf
    %631 = vmax.xlane.f32.xlu0 %v630
    %v632 = vpop.xlane.xlu0 %631
    %v633 = vsub.f32 %v625, %v632
    %v634 = vmul.f32 %v633, 1.442695
    %v635 = vpow.pop %v634
    %v636 = vsel %vm171, %v635, 0.0
    %637 = vadd.xlane.f32.xlu0 %v636
    %v638 = vpop.xlane.xlu0 %637
    %v639 = vrcp.pop %v638
    %v640 = vmul.f32 %v635, %v639
    %v641 = vpack.c.bf16 %v640, %v640
    %v642 = vrot.slane %v120, 4
    %v644 = vsel %vm171, %v641, 0
    %v647 = vsel %vm187, %v642, 0
    %649 = vmatprep.subr.bf16.mxu0 0
    %650 = vmatpush1.bf16.msra.mxu0 %v647
    %651 = vmatprep.subr.bf16.mxu0 0
    %652 = vmatpush1.bf16.msra.mxu0 0
    %653 = vmatprep.subr.bf16.mxu0 0
    %654 = vmatpush1.bf16.msra.mxu0 0
    %655 = vmatprep.subr.bf16.mxu0 0
    %656 = vmatpush1.bf16.msra.mxu0 0
    %657 = vmatprep.subr.bf16.mxu0 0
    %658 = vmatpush1.bf16.msra.mxu0 0
    %659 = vmatprep.subr.bf16.mxu0 0
    %660 = vmatpush1.bf16.msra.mxu0 0
    %661 = vmatprep.subr.bf16.mxu0 0
    %662 = vmatpush1.bf16.msra.mxu0 0
    %663 = vmatprep.subr.bf16.mxu0 0
    %664 = vmatpush1.bf16.msra.mxu0 0
    %665 = vmatprep.subr.bf16.mxu0 0
    %666 = vmatpush1.bf16.msra.mxu0 0
    %667 = vmatprep.subr.bf16.mxu0 0
    %668 = vmatpush1.bf16.msra.mxu0 0
    %669 = vmatprep.subr.bf16.mxu0 0
    %670 = vmatpush1.bf16.msra.mxu0 0
    %671 = vmatprep.subr.bf16.mxu0 0
    %672 = vmatpush1.bf16.msra.mxu0 0
    %673 = vmatprep.subr.bf16.mxu0 0
    %674 = vmatpush1.bf16.msra.mxu0 0
    %675 = vmatprep.subr.bf16.mxu0 0
    %676 = vmatpush1.bf16.msra.mxu0 0
    %677 = vmatprep.subr.bf16.mxu0 0
    %678 = vmatpush1.bf16.msra.mxu0 0
    %679 = vmatprep.subr.bf16.mxu0 0
    %680 = vmatpush1.bf16.msra.mxu0 0
    %681 = vmatprep.mubr.bf16.mxu0 0
    %682 = vmatmul.mubr.bf16.gmra.mrb[0].mxu0 %v644
    %v683 = vpop.f32.mrb[0].mxu0
    %v684 = vadd.f32 0.0, %v683
    %v685 = vpop.f32.mrb[0].mxu0
    %v686 = vpop.f32.mrb[0].mxu0
    %v687 = vpop.f32.mrb[0].mxu0
    %688 = vdwg.mxu0
    %s689 = scalar_lea.vmem [#allocation7], 8
    %690 = vst.msk [vmem:[%s689] sm:$0xff] %vm124, %v684
    %691 = vrot.lane.b32.xlu0 %v581, 112
    %v692 = vpop.permute.xlu0 %691
    %693 = vrot.lane.b32.xlu0 %v581, 48
    %v694 = vpop.permute.xlu0 %693
    %v696 = vsel %vm124, %v692, 0
    %v699 = vsel %vm124, %v694, 0
    %701 = vmatprep.subr.bf16.mxu0 0
    %702 = vmatpush1.bf16.xpose.msra.mxu0 %v699
    %703 = vmatprep.subr.bf16.mxu0 0
    %704 = vmatpush1.bf16.xpose.msra.mxu0 0
    %705 = vmatprep.subr.bf16.mxu0 0
    %706 = vmatpush1.bf16.xpose.msra.mxu0 0
    %707 = vmatprep.subr.bf16.mxu0 0
    %708 = vmatpush1.bf16.xpose.msra.mxu0 0
    %709 = vmatprep.subr.bf16.mxu0 0
    %710 = vmatpush1.bf16.xpose.msra.mxu0 0
    %711 = vmatprep.subr.bf16.mxu0 0
    %712 = vmatpush1.bf16.xpose.msra.mxu0 0
    %713 = vmatprep.subr.bf16.mxu0 0
    %714 = vmatpush1.bf16.xpose.msra.mxu0 0
    %715 = vmatprep.subr.bf16.mxu0 0
    %716 = vmatpush1.bf16.xpose.msra.mxu0 0
    %717 = vmatprep.subr.bf16.mxu0 0
    %718 = vmatpush1.bf16.xpose.msra.mxu0 0
    %719 = vmatprep.subr.bf16.mxu0 0
    %720 = vmatpush1.bf16.xpose.msra.mxu0 0
    %721 = vmatprep.subr.bf16.mxu0 0
    %722 = vmatpush1.bf16.xpose.msra.mxu0 0
    %723 = vmatprep.subr.bf16.mxu0 0
    %724 = vmatpush1.bf16.xpose.msra.mxu0 0
    %725 = vmatprep.subr.bf16.mxu0 0
    %726 = vmatpush1.bf16.xpose.msra.mxu0 0
    %727 = vmatprep.subr.bf16.mxu0 0
    %728 = vmatpush1.bf16.xpose.msra.mxu0 0
    %729 = vmatprep.subr.bf16.mxu0 0
    %730 = vmatpush1.bf16.xpose.msra.mxu0 0
    %731 = vmatprep.subr.bf16.mxu0 0
    %732 = vmatpush1.bf16.xpose.msra.mxu0 0
    %733 = vmatprep.mubr.bf16.mxu0 0
    %734 = vmatmul.mubr.bf16.gmra.mrb[0].mxu0 %v696
    %v735 = vpop.f32.mrb[0].mxu0
    %v736 = vadd.f32 0.0, %v735
    %v737 = vpop.f32.mrb[0].mxu0
    %v738 = vpop.f32.mrb[0].mxu0
    %v739 = vpop.f32.mrb[0].mxu0
    %740 = vdwg.mxu0
    %v741 = vsel %vm171, %v736, -inf
    %742 = vmax.xlane.f32.xlu0 %v741
    %v743 = vpop.xlane.xlu0 %742
    %v744 = vsub.f32 %v736, %v743
    %v745 = vmul.f32 %v744, 1.442695
    %v746 = vpow.pop %v745
    %v747 = vsel %vm171, %v746, 0.0
    %748 = vadd.xlane.f32.xlu0 %v747
    %v749 = vpop.xlane.xlu0 %748
    %v750 = vrcp.pop %v749
    %v751 = vmul.f32 %v746, %v750
    %v752 = vpack.c.bf16 %v751, %v751
    %753 = vrot.lane.b32.xlu0 %v642, 112
    %v754 = vpop.permute.xlu0 %753
    %v756 = vsel %vm171, %v752, 0
    %v759 = vsel %vm187, %v754, 0
    %761 = vmatprep.subr.bf16.mxu0 0
    %762 = vmatpush1.bf16.msra.mxu0 %v759
    %763 = vmatprep.subr.bf16.mxu0 0
    %764 = vmatpush1.bf16.msra.mxu0 0
    %765 = vmatprep.subr.bf16.mxu0 0
    %766 = vmatpush1.bf16.msra.mxu0 0
    %767 = vmatprep.subr.bf16.mxu0 0
    %768 = vmatpush1.bf16.msra.mxu0 0
    %769 = vmatprep.subr.bf16.mxu0 0
    %770 = vmatpush1.bf16.msra.mxu0 0
    %771 = vmatprep.subr.bf16.mxu0 0
    %772 = vmatpush1.bf16.msra.mxu0 0
    %773 = vmatprep.subr.bf16.mxu0 0
    %774 = vmatpush1.bf16.msra.mxu0 0
    %775 = vmatprep.subr.bf16.mxu0 0
    %776 = vmatpush1.bf16.msra.mxu0 0
    %777 = vmatprep.subr.bf16.mxu0 0
    %778 = vmatpush1.bf16.msra.mxu0 0
    %779 = vmatprep.subr.bf16.mxu0 0
    %780 = vmatpush1.bf16.msra.mxu0 0
    %781 = vmatprep.subr.bf16.mxu0 0
    %782 = vmatpush1.bf16.msra.mxu0 0
    %783 = vmatprep.subr.bf16.mxu0 0
    %784 = vmatpush1.bf16.msra.mxu0 0
    %785 = vmatprep.subr.bf16.mxu0 0
    %786 = vmatpush1.bf16.msra.mxu0 0
    %787 = vmatprep.subr.bf16.mxu0 0
    %788 = vmatpush1.bf16.msra.mxu0 0
    %789 = vmatprep.subr.bf16.mxu0 0
    %790 = vmatpush1.bf16.msra.mxu0 0
    %791 = vmatprep.subr.bf16.mxu0 0
    %792 = vmatpush1.bf16.msra.mxu0 0
    %793 = vmatprep.mubr.bf16.mxu0 0
    %794 = vmatmul.mubr.bf16.gmra.mrb[0].mxu0 %v756
    %v795 = vpop.f32.mrb[0].mxu0
    %v796 = vadd.f32 0.0, %v795
    %v797 = vpop.f32.mrb[0].mxu0
    %v798 = vpop.f32.mrb[0].mxu0
    %v799 = vpop.f32.mrb[0].mxu0
    %800 = vdwg.mxu0
    %802 = vrot.lane.b32.xlu0 %v796, 16
    %v803 = vpop.permute.xlu0 %802
    %805 = vst.msk [vmem:[%s689] sm:$0xff] %vm347, %v803
    %806 = vrot.lane.b32.xlu0 %v581, 96
    %v807 = vpop.permute.xlu0 %806
    %808 = vrot.lane.b32.xlu0 %v581, 32
    %v809 = vpop.permute.xlu0 %808
    %v811 = vsel %vm124, %v807, 0
    %v814 = vsel %vm124, %v809, 0
    %816 = vmatprep.subr.bf16.mxu0 0
    %817 = vmatpush1.bf16.xpose.msra.mxu0 %v814
    %818 = vmatprep.subr.bf16.mxu0 0
    %819 = vmatpush1.bf16.xpose.msra.mxu0 0
    %820 = vmatprep.subr.bf16.mxu0 0
    %821 = vmatpush1.bf16.xpose.msra.mxu0 0
    %822 = vmatprep.subr.bf16.mxu0 0
    %823 = vmatpush1.bf16.xpose.msra.mxu0 0
    %824 = vmatprep.subr.bf16.mxu0 0
    %825 = vmatpush1.bf16.xpose.msra.mxu0 0
    %826 = vmatprep.subr.bf16.mxu0 0
    %827 = vmatpush1.bf16.xpose.msra.mxu0 0
    %828 = vmatprep.subr.bf16.mxu0 0
    %829 = vmatpush1.bf16.xpose.msra.mxu0 0
    %830 = vmatprep.subr.bf16.mxu0 0
    %831 = vmatpush1.bf16.xpose.msra.mxu0 0
    %832 = vmatprep.subr.bf16.mxu0 0
    %833 = vmatpush1.bf16.xpose.msra.mxu0 0
    %834 = vmatprep.subr.bf16.mxu0 0
    %835 = vmatpush1.bf16.xpose.msra.mxu0 0
    %836 = vmatprep.subr.bf16.mxu0 0
    %837 = vmatpush1.bf16.xpose.msra.mxu0 0
    %838 = vmatprep.subr.bf16.mxu0 0
    %839 = vmatpush1.bf16.xpose.msra.mxu0 0
    %840 = vmatprep.subr.bf16.mxu0 0
    %841 = vmatpush1.bf16.xpose.msra.mxu0 0
    %842 = vmatprep.subr.bf16.mxu0 0
    %843 = vmatpush1.bf16.xpose.msra.mxu0 0
    %844 = vmatprep.subr.bf16.mxu0 0
    %845 = vmatpush1.bf16.xpose.msra.mxu0 0
    %846 = vmatprep.subr.bf16.mxu0 0
    %847 = vmatpush1.bf16.xpose.msra.mxu0 0
    %848 = vmatprep.mubr.bf16.mxu0 0
    %849 = vmatmul.mubr.bf16.gmra.mrb[0].mxu0 %v811
    %v850 = vpop.f32.mrb[0].mxu0
    %v851 = vadd.f32 0.0, %v850
    %v852 = vpop.f32.mrb[0].mxu0
    %v853 = vpop.f32.mrb[0].mxu0
    %v854 = vpop.f32.mrb[0].mxu0
    %855 = vdwg.mxu0
    %v856 = vsel %vm171, %v851, -inf
    %857 = vmax.xlane.f32.xlu0 %v856
    %v858 = vpop.xlane.xlu0 %857
    %v859 = vsub.f32 %v851, %v858
    %v860 = vmul.f32 %v859, 1.442695
    %v861 = vpow.pop %v860
    %v862 = vsel %vm171, %v861, 0.0
    %863 = vadd.xlane.f32.xlu0 %v862
    %v864 = vpop.xlane.xlu0 %863
    %v865 = vrcp.pop %v864
    %v866 = vmul.f32 %v861, %v865
    %v867 = vpack.c.bf16 %v866, %v866
    %868 = vrot.lane.b32.xlu0 %v642, 96
    %v869 = vpop.permute.xlu0 %868
    %v871 = vsel %vm171, %v867, 0
    %v874 = vsel %vm187, %v869, 0
    %876 = vmatprep.subr.bf16.mxu0 0
    %877 = vmatpush1.bf16.msra.mxu0 %v874
    %878 = vmatprep.subr.bf16.mxu0 0
    %879 = vmatpush1.bf16.msra.mxu0 0
    %880 = vmatprep.subr.bf16.mxu0 0
    %881 = vmatpush1.bf16.msra.mxu0 0
    %882 = vmatprep.subr.bf16.mxu0 0
    %883 = vmatpush1.bf16.msra.mxu0 0
    %884 = vmatprep.subr.bf16.mxu0 0
    %885 = vmatpush1.bf16.msra.mxu0 0
    %886 = vmatprep.subr.bf16.mxu0 0
    %887 = vmatpush1.bf16.msra.mxu0 0
    %888 = vmatprep.subr.bf16.mxu0 0
    %889 = vmatpush1.bf16.msra.mxu0 0
    %890 = vmatprep.subr.bf16.mxu0 0
    %891 = vmatpush1.bf16.msra.mxu0 0
    %892 = vmatprep.subr.bf16.mxu0 0
    %893 = vmatpush1.bf16.msra.mxu0 0
    %894 = vmatprep.subr.bf16.mxu0 0
    %895 = vmatpush1.bf16.msra.mxu0 0
    %896 = vmatprep.subr.bf16.mxu0 0
    %897 = vmatpush1.bf16.msra.mxu0 0
    %898 = vmatprep.subr.bf16.mxu0 0
    %899 = vmatpush1.bf16.msra.mxu0 0
    %900 = vmatprep.subr.bf16.mxu0 0
    %901 = vmatpush1.bf16.msra.mxu0 0
    %902 = vmatprep.subr.bf16.mxu0 0
    %903 = vmatpush1.bf16.msra.mxu0 0
    %904 = vmatprep.subr.bf16.mxu0 0
    %905 = vmatpush1.bf16.msra.mxu0 0
    %906 = vmatprep.subr.bf16.mxu0 0
    %907 = vmatpush1.bf16.msra.mxu0 0
    %908 = vmatprep.mubr.bf16.mxu0 0
    %909 = vmatmul.mubr.bf16.gmra.mrb[0].mxu0 %v871
    %v910 = vpop.f32.mrb[0].mxu0
    %v911 = vadd.f32 0.0, %v910
    %v912 = vpop.f32.mrb[0].mxu0
    %v913 = vpop.f32.mrb[0].mxu0
    %v914 = vpop.f32.mrb[0].mxu0
    %915 = vdwg.mxu0
    %917 = vrot.lane.b32.xlu0 %v911, 32
    %v918 = vpop.permute.xlu0 %917
    %920 = vst.msk [vmem:[%s689] sm:$0xff] %vm463, %v918
    %921 = vrot.lane.b32.xlu0 %v581, 80
    %v922 = vpop.permute.xlu0 %921
    %923 = vrot.lane.b32.xlu0 %v581, 16
    %v924 = vpop.permute.xlu0 %923
    %v926 = vsel %vm124, %v922, 0
    %v929 = vsel %vm124, %v924, 0
    %931 = vmatprep.subr.bf16.mxu0 0
    %932 = vmatpush1.bf16.xpose.msra.mxu0 %v929
    %933 = vmatprep.subr.bf16.mxu0 0
    %934 = vmatpush1.bf16.xpose.msra.mxu0 0
    %935 = vmatprep.subr.bf16.mxu0 0
    %936 = vmatpush1.bf16.xpose.msra.mxu0 0
    %937 = vmatprep.subr.bf16.mxu0 0
    %938 = vmatpush1.bf16.xpose.msra.mxu0 0
    %939 = vmatprep.subr.bf16.mxu0 0
    %940 = vmatpush1.bf16.xpose.msra.mxu0 0
    %941 = vmatprep.subr.bf16.mxu0 0
    %942 = vmatpush1.bf16.xpose.msra.mxu0 0
    %943 = vmatprep.subr.bf16.mxu0 0
    %944 = vmatpush1.bf16.xpose.msra.mxu0 0
    %945 = vmatprep.subr.bf16.mxu0 0
    %946 = vmatpush1.bf16.xpose.msra.mxu0 0
    %947 = vmatprep.subr.bf16.mxu0 0
    %948 = vmatpush1.bf16.xpose.msra.mxu0 0
    %949 = vmatprep.subr.bf16.mxu0 0
    %950 = vmatpush1.bf16.xpose.msra.mxu0 0
    %951 = vmatprep.subr.bf16.mxu0 0
    %952 = vmatpush1.bf16.xpose.msra.mxu0 0
    %953 = vmatprep.subr.bf16.mxu0 0
    %954 = vmatpush1.bf16.xpose.msra.mxu0 0
    %955 = vmatprep.subr.bf16.mxu0 0
    %956 = vmatpush1.bf16.xpose.msra.mxu0 0
    %957 = vmatprep.subr.bf16.mxu0 0
    %958 = vmatpush1.bf16.xpose.msra.mxu0 0
    %959 = vmatprep.subr.bf16.mxu0 0
    %960 = vmatpush1.bf16.xpose.msra.mxu0 0
    %961 = vmatprep.subr.bf16.mxu0 0
    %962 = vmatpush1.bf16.xpose.msra.mxu0 0
    %963 = vmatprep.mubr.bf16.mxu0 0
    %964 = vmatmul.mubr.bf16.gmra.mrb[0].mxu0 %v926
    %v965 = vpop.f32.mrb[0].mxu0
    %v966 = vadd.f32 0.0, %v965
    %v967 = vpop.f32.mrb[0].mxu0
    %v968 = vpop.f32.mrb[0].mxu0
    %v969 = vpop.f32.mrb[0].mxu0
    %970 = vdwg.mxu0
    %v971 = vsel %vm171, %v966, -inf
    %972 = vmax.xlane.f32.xlu0 %v971
    %v973 = vpop.xlane.xlu0 %972
    %v974 = vsub.f32 %v966, %v973
    %v975 = vmul.f32 %v974, 1.442695
    %v976 = vpow.pop %v975
    %v977 = vsel %vm171, %v976, 0.0
    %978 = vadd.xlane.f32.xlu0 %v977
    %v979 = vpop.xlane.xlu0 %978
    %v980 = vrcp.pop %v979
    %v981 = vmul.f32 %v976, %v980
    %v982 = vpack.c.bf16 %v981, %v981
    %983 = vrot.lane.b32.xlu0 %v642, 80
    %v984 = vpop.permute.xlu0 %983
    %v986 = vsel %vm171, %v982, 0
    %v989 = vsel %vm187, %v984, 0
    %991 = vmatprep.subr.bf16.mxu0 0
    %992 = vmatpush1.bf16.msra.mxu0 %v989
    %993 = vmatprep.subr.bf16.mxu0 0
    %994 = vmatpush1.bf16.msra.mxu0 0
    %995 = vmatprep.subr.bf16.mxu0 0
    %996 = vmatpush1.bf16.msra.mxu0 0
    %997 = vmatprep.subr.bf16.mxu0 0
    %998 = vmatpush1.bf16.msra.mxu0 0
    %999 = vmatprep.subr.bf16.mxu0 0
    %1000 = vmatpush1.bf16.msra.mxu0 0
    %1001 = vmatprep.subr.bf16.mxu0 0
    %1002 = vmatpush1.bf16.msra.mxu0 0
    %1003 = vmatprep.subr.bf16.mxu0 0
    %1004 = vmatpush1.bf16.msra.mxu0 0
    %1005 = vmatprep.subr.bf16.mxu0 0
    %1006 = vmatpush1.bf16.msra.mxu0 0
    %1007 = vmatprep.subr.bf16.mxu0 0
    %1008 = vmatpush1.bf16.msra.mxu0 0
    %1009 = vmatprep.subr.bf16.mxu0 0
    %1010 = vmatpush1.bf16.msra.mxu0 0
    %1011 = vmatprep.subr.bf16.mxu0 0
    %1012 = vmatpush1.bf16.msra.mxu0 0
    %1013 = vmatprep.subr.bf16.mxu0 0
    %1014 = vmatpush1.bf16.msra.mxu0 0
    %1015 = vmatprep.subr.bf16.mxu0 0
    %1016 = vmatpush1.bf16.msra.mxu0 0
    %1017 = vmatprep.subr.bf16.mxu0 0
    %1018 = vmatpush1.bf16.msra.mxu0 0
    %1019 = vmatprep.subr.bf16.mxu0 0
    %1020 = vmatpush1.bf16.msra.mxu0 0
    %1021 = vmatprep.subr.bf16.mxu0 0
    %1022 = vmatpush1.bf16.msra.mxu0 0
    %1023 = vmatprep.mubr.bf16.mxu0 0
    %1024 = vmatmul.mubr.bf16.gmra.mrb[0].mxu0 %v986
    %v1025 = vpop.f32.mrb[0].mxu0
    %v1026 = vadd.f32 0.0, %v1025
    %v1027 = vpop.f32.mrb[0].mxu0
    %v1028 = vpop.f32.mrb[0].mxu0
    %v1029 = vpop.f32.mrb[0].mxu0
    %1030 = vdwg.mxu0
    %1032 = vrot.lane.b32.xlu0 %v1026, 48
    %v1033 = vpop.permute.xlu0 %1032
    %1035 = vst.msk [vmem:[%s689] sm:$0xff] %vm579, %v1033
    // Predicated region
    $region18: #{tpu_custom_call.1} parent=1 // pred_check
      _
    $region19: #{tpu_custom_call.1} parent=1 // pred_check_branch
      %1037 = sbr.rel (0) target = $region21
    $region20: #{tpu_custom_call.1} parent=1 // pred_region
      %s1039 = ssub.s32 256, 256
      %1040 = vsyncadd [#allocation4], %s1039
      %s1041 = sshll.u32 [#allocation7], 4
      %s1042 = int_to_ptr.vmem [resolvable:$true] %s1041
      %1047 = dma.vmem_to_hbm [thread:$0]  %s1042, 256, %s2, [#allocation4], 128, 128, 8
    $region21: #{tpu_custom_call.1} parent=1 // pred_fallthru
      _
    // Predicated region
    $region22: #{tpu_custom_call.1} parent=1 // pred_check
      _
    $region23: #{tpu_custom_call.1} parent=1 // pred_check_branch
      %1049 = sbr.rel (0) target = $region25
    $region24: #{tpu_custom_call.1} parent=1 // pred_region
      %1050 = dma.done [#allocation4], 256
    $region25: #{tpu_custom_call.1} parent=1 // pred_fallthru
      _
    %1051 = vsyncpa [#allocation3], 1
    %1052 = vsyncpa [#allocation6], 1
    %1053 = vsyncpa [#allocation4], 1

</llo_original>
